<compile_context>
chip_gen: v6e
topology: v6e:2x2x1
jax: 0.10.0
libtpu: 0.0.40
codegen_flags: <defaults>
</compile_context>

<pallas_src>
import jax
import jax.numpy as jnp
from jax.experimental import pallas as pl
from jax.experimental.pallas import tpu as pltpu


def rnn_cell_kernel(x_ref, h_ref, wx_ref, wh_ref, b_ref, out_ref, h_out_ref):
    hidden_size = h_out_ref.shape[-1]

    # fused = [x | h] @ [w_ih | w_io] + [b_ih | b_io], computed without any
    # lane-axis concatenation: split along K, fused along N.
    fused = jnp.dot(x_ref[...], wx_ref[...], preferred_element_type=jnp.float32)
    fused = fused + jnp.dot(h_ref[...], wh_ref[...],
                            preferred_element_type=jnp.float32)
    fused = fused + b_ref[...]                     # bias added once (broadcast-ready)

    # hidden = i2h(combined): first hidden_size columns of the fused result.
    h_out_ref[...] = fused[:, :hidden_size]

    # output = log_softmax(i2o(combined)): remaining columns, stable log-softmax.
    logits = fused[:, hidden_size:]
    m = jnp.max(logits, axis=1, keepdims=True)
    shifted = logits - m
    lse = jnp.log(jnp.sum(jnp.exp(shifted), axis=1, keepdims=True))
    out_ref[...] = shifted - lse


def prepare_params(w_ih, b_ih, w_io, b_io, input_size):
    """One-time parameter prep: fuse the two Linear layers along N and split
    the fused weight along K so the kernel never concatenates on the lane axis."""
    w_cat = jnp.concatenate([w_ih, w_io], axis=1)      # (in+hid, hid+out)
    w_x = w_cat[:input_size]                           # (in,      hid+out)
    w_h = w_cat[input_size:]                           # (hid,     hid+out)
    b_cat = jnp.concatenate([b_ih, b_io], axis=1)      # (1,       hid+out)
    return w_x, w_h, b_cat


def rnn_cell(x, h, w_x, w_h, b_cat, *, hidden_size, output_size):
    B = x.shape[0]
    vmem = pl.BlockSpec(memory_space=pltpu.MemorySpace.VMEM)
    out, new_h = pl.pallas_call(
        rnn_cell_kernel,
        out_shape=(
            jax.ShapeDtypeStruct((B, output_size), jnp.float32),
            jax.ShapeDtypeStruct((B, hidden_size), jnp.float32),
        ),
        in_specs=[vmem] * 5,
        out_specs=(vmem, vmem),
    )(x, h, w_x, w_h, b_cat)
    return out, new_h


def reference(x, h, w_ih, b_ih, w_io, b_io):
    combined = jnp.concatenate([x, h], axis=1)
    new_h = combined @ w_ih + b_ih
    logits = combined @ w_io + b_io
    return jax.nn.log_softmax(logits, axis=1), new_h


if __name__ == "__main__":
    # Small, module-consistent sizes.  batch=8 fills a full sublane group.
    batch = 8
    input_size = 16
    hidden_size = 32
    output_size = 8

    key = jax.random.PRNGKey(0)
    k_x, k_h, k_wih, k_bih, k_wio, k_bio = jax.random.split(key, 6)

    x = jax.random.normal(k_x, (batch, input_size), dtype=jnp.float32)
    h = jax.random.normal(k_h, (batch, hidden_size), dtype=jnp.float32)

    # Deterministic synthetic parameters (nn.Linear-style uniform scale).
    fan_in = input_size + hidden_size
    bound = 1.0 / (fan_in ** 0.5)
    w_ih = jax.random.uniform(k_wih, (fan_in, hidden_size),
                              minval=-bound, maxval=bound, dtype=jnp.float32)
    b_ih = jax.random.uniform(k_bih, (1, hidden_size),
                              minval=-bound, maxval=bound, dtype=jnp.float32)
    w_io = jax.random.uniform(k_wio, (fan_in, output_size),
                              minval=-bound, maxval=bound, dtype=jnp.float32)
    b_io = jax.random.uniform(k_bio, (1, output_size),
                              minval=-bound, maxval=bound, dtype=jnp.float32)

    # One-time weight fusion / split (outside the per-step hot path).
    w_x, w_h, b_cat = prepare_params(w_ih, b_ih, w_io, b_io, input_size)

    step = jax.jit(lambda xx, hh: rnn_cell(
        xx, hh, w_x, w_h, b_cat,
        hidden_size=hidden_size, output_size=output_size))

    out, new_h = jax.block_until_ready(step(x, h))

    ref_out, ref_h = reference(x, h, w_ih, b_ih, w_io, b_io)
    assert jnp.allclose(out, ref_out, atol=1e-5, rtol=1e-5), \
        "log_softmax output mismatch"
    assert jnp.allclose(new_h, ref_h, atol=1e-5, rtol=1e-5), \
        "hidden output mismatch"

    print("KERNEL_OK")
</pallas_src>

<mosaic_0001>
module attributes {stable_mosaic.version = 11 : i64} {
  func.func @rnn_cell_kernel(%arg0: memref<8x16xf32, #tpu.memory_space<vmem>>, %arg1: memref<8x32xf32, #tpu.memory_space<vmem>>, %arg2: memref<16x40xf32, #tpu.memory_space<vmem>>, %arg3: memref<32x40xf32, #tpu.memory_space<vmem>>, %arg4: memref<1x40xf32, #tpu.memory_space<vmem>>, %arg5: memref<8x8xf32, #tpu.memory_space<vmem>>, %arg6: memref<8x32xf32, #tpu.memory_space<vmem>>) attributes {dimension_semantics = [], scalar_prefetch = 0 : i64, scratch_operands = 0 : i64, tpu.core_type = #tpu.core_type<tc>} {
    %c0 = arith.constant 0 : index
    %c0_0 = arith.constant 0 : index
    %0 = vector.load %arg0[%c0, %c0_0] : memref<8x16xf32, #tpu.memory_space<vmem>>, vector<8x16xf32>
    %c0_1 = arith.constant 0 : index
    %c0_2 = arith.constant 0 : index
    %1 = vector.load %arg2[%c0_1, %c0_2] : memref<16x40xf32, #tpu.memory_space<vmem>>, vector<16x40xf32>
    %cst = arith.constant dense<0.000000e+00> : vector<8x40xf32>
    %2 = tpu.matmul %0, %1, %cst {dimension_numbers = #tpu.dot_dimension_numbers<[1], [0], [0], [1], [0, 0, 1, 1], [], []>} : vector<8x16xf32>, vector<16x40xf32>, vector<8x40xf32> -> vector<8x40xf32>
    %c0_3 = arith.constant 0 : index
    %c0_4 = arith.constant 0 : index
    %3 = vector.load %arg1[%c0_3, %c0_4] : memref<8x32xf32, #tpu.memory_space<vmem>>, vector<8x32xf32>
    %c0_5 = arith.constant 0 : index
    %c0_6 = arith.constant 0 : index
    %4 = vector.load %arg3[%c0_5, %c0_6] : memref<32x40xf32, #tpu.memory_space<vmem>>, vector<32x40xf32>
    %cst_7 = arith.constant dense<0.000000e+00> : vector<8x40xf32>
    %5 = tpu.matmul %3, %4, %cst_7 {dimension_numbers = #tpu.dot_dimension_numbers<[1], [0], [0], [1], [0, 0, 1, 1], [], []>} : vector<8x32xf32>, vector<32x40xf32>, vector<8x40xf32> -> vector<8x40xf32>
    %6 = arith.addf %2, %5 : vector<8x40xf32>
    %c0_8 = arith.constant 0 : index
    %c0_9 = arith.constant 0 : index
    %7 = vector.load %arg4[%c0_8, %c0_9] : memref<1x40xf32, #tpu.memory_space<vmem>>, vector<1x40xf32>
    %8 = vector.broadcast %7 : vector<1x40xf32> to vector<8x40xf32>
    %9 = arith.addf %6, %8 : vector<8x40xf32>
    %10 = vector.extract_strided_slice %9 {offsets = [0, 0], sizes = [8, 32], strides = [1, 1]} : vector<8x40xf32> to vector<8x32xf32>
    %c0_10 = arith.constant 0 : index
    %c0_11 = arith.constant 0 : index
    %11 = vector.load %arg6[%c0_10, %c0_11] : memref<8x32xf32, #tpu.memory_space<vmem>>, vector<8x32xf32>
    tpu.vector_store %arg6[%c0_10, %c0_11], %10 {strides = array<i32>} : memref<8x32xf32, #tpu.memory_space<vmem>>, vector<8x32xf32>,
    %12 = vector.extract_strided_slice %9 {offsets = [0, 32], sizes = [8, 8], strides = [1, 1]} : vector<8x40xf32> to vector<8x8xf32>
    %cst_12 = arith.constant dense<0xFF800000> : vector<8xf32>
    %13 = vector.multi_reduction <maximumf>, %12, %cst_12 [1] : vector<8x8xf32> to vector<8xf32>
    %14 = vector.shape_cast %13 : vector<8xf32> to vector<8x1xf32>
    %15 = vector.broadcast %14 : vector<8x1xf32> to vector<8x8xf32>
    %16 = arith.subf %12, %15 : vector<8x8xf32>
    %17 = math.exp %16 : vector<8x8xf32>
    %cst_13 = arith.constant dense<0.000000e+00> : vector<8xf32>
    %18 = vector.multi_reduction <add>, %17, %cst_13 [1] : vector<8x8xf32> to vector<8xf32>
    %19 = vector.shape_cast %18 : vector<8xf32> to vector<8x1xf32>
    %20 = math.log %19 : vector<8x1xf32>
    %21 = vector.broadcast %20 : vector<8x1xf32> to vector<8x8xf32>
    %22 = arith.subf %16, %21 : vector<8x8xf32>
    %c0_14 = arith.constant 0 : index
    %c0_15 = arith.constant 0 : index
    %23 = vector.load %arg5[%c0_14, %c0_15] : memref<8x8xf32, #tpu.memory_space<vmem>>, vector<8x8xf32>
    tpu.vector_store %arg5[%c0_14, %c0_15], %22 {strides = array<i32>} : memref<8x8xf32, #tpu.memory_space<vmem>>, vector<8x8xf32>,
    return
  }
}

</mosaic_0001>

<llo_original>
// kernel: _lambda_.1
$region0: #{_lambda_.1}
  #allocation0 [shape = 'u32[]', space=smem, size = 0x4, offset = 0x4, fixed_abs, tag = 'smem constant byte address 0x4 - core index']
  #allocation1 [shape = 'u32[144,128]{1,0:T(1,128)}', space=vmem, size = 0x12000, scoped, tag = 'internal scratch']
  %s0 = inlined_call_operand.hbm [shape: f32[8,16], index: 0, kind: input, shape index: {}]
  %s1 = inlined_call_operand.hbm [shape: f32[8,32], index: 1, kind: input, shape index: {}]
  %s2 = inlined_call_operand.hbm [shape: f32[16,40], index: 2, kind: input, shape index: {}]
  %s3 = inlined_call_operand.hbm [shape: f32[32,40], index: 3, kind: input, shape index: {}]
  %s4 = inlined_call_operand.vmem [shape: f32[1,40], index: 4, kind: input, shape index: {}]
  %s5 = inlined_call_operand.hbm [shape: f32[8,8], index: 5, kind: output, shape index: {0}]
  %s6 = inlined_call_operand.hbm [shape: f32[8,32], index: 6, kind: output, shape index: {1}]
  %7 = xla_tuple %s5, %s6
  %s8 = sld [smem:[#allocation0]]
  $region54: #{_lambda_.1} parent=0
    _
  %s10 = ssub.s32 1, %s8
  %s11 = scalar_select 0, %s10, %s8
  $region1: #{_lambda_.1} parent=0
    #allocation2 [shape = 'u8[4096]{0}', space=vmem, size = 0x1000, scoped, tag = 'input window, operand 0, single buffered']
    #allocation3 [shape = 's32[1]{0}', space=sflag, size = 0x4, scoped, tag = 'scoped memory for _lambda_.1']
    #allocation4 [shape = 's32[1]{0}', space=sflag, size = 0x4, scoped, tag = 'scoped memory for _lambda_.1']
    #allocation5 [shape = 'u8[4096]{0}', space=vmem, size = 0x1000, scoped, tag = 'input window, operand 1, single buffered']
    #allocation6 [shape = 's32[1]{0}', space=sflag, size = 0x4, scoped, tag = 'scoped memory for _lambda_.1']
    #allocation7 [shape = 'u8[8192]{0}', space=vmem, size = 0x2000, scoped, tag = 'input window, operand 2, single buffered']
    #allocation8 [shape = 'u8[16384]{0}', space=vmem, size = 0x4000, scoped, tag = 'input window, operand 3, single buffered']
    #allocation9 [shape = 's32[1]{0}', space=sflag, size = 0x4, scoped, tag = 'scoped memory for _lambda_.1']
    #allocation10 [shape = 'u8[4096]{0}', space=vmem, size = 0x1000, scoped, tag = 'output window, operand 0, single buffered']
    #allocation11 [shape = 'u8[4096]{0}', space=vmem, size = 0x1000, scoped, tag = 'output window, operand 1, single buffered']
    #allocation12 [shape = 's32[1]{0}', space=sflag, size = 0x4, scoped, tag = 'scoped memory for _lambda_.1']
    %12 = vsyncpa [#allocation3], 0
    %13 = vsyncpa [#allocation6], 0
    %14 = vsyncpa [#allocation9], 0
    %15 = vsyncpa [#allocation4], 0
    %16 = vsyncpa [#allocation12], 0
    // Predicated region
    $region2: #{_lambda_.1} parent=1 // pred_check
      _
    $region3: #{_lambda_.1} parent=1 // pred_check_branch
      %18 = sbr.rel (0) target = $region5
    $region4: #{_lambda_.1} parent=1 // pred_region
      %s20 = ssub.s32 128, 128
      %21 = vsyncadd [#allocation3], %s20
      %s23 = sshll.u32 [#allocation2], 4
      %s24 = int_to_ptr.vmem [resolvable:$true] %s23
      %26 = dma.hbm_to_vmem [thread:$0]  %s0, 128, %s24, [#allocation3]
    $region5: #{_lambda_.1} parent=1 // pred_fallthru
      _
    // Predicated region
    $region6: #{_lambda_.1} parent=1 // pred_check
      _
    $region7: #{_lambda_.1} parent=1 // pred_check_branch
      %28 = sbr.rel (0) target = $region9
    $region8: #{_lambda_.1} parent=1 // pred_region
      %s30 = ssub.s32 128, 128
      %31 = vsyncadd [#allocation6], %s30
      %s33 = sshll.u32 [#allocation5], 4
      %s34 = int_to_ptr.vmem [resolvable:$true] %s33
      %36 = dma.hbm_to_vmem [thread:$0]  %s1, 128, %s34, [#allocation6]
    $region9: #{_lambda_.1} parent=1 // pred_fallthru
      _
    // Predicated region
    $region10: #{_lambda_.1} parent=1 // pred_check
      _
    $region11: #{_lambda_.1} parent=1 // pred_check_branch
      %38 = sbr.rel (0) target = $region13
    $region12: #{_lambda_.1} parent=1 // pred_region
      %s40 = ssub.s32 256, 256
      %41 = vsyncadd [#allocation6], %s40
      %s42 = sshll.u32 [#allocation7], 4
      %s43 = int_to_ptr.vmem [resolvable:$true] %s42
      %48 = dma.hbm_to_vmem [thread:$0]  %s2, 256, %s43, [#allocation6], 128, 128, 8
    $region13: #{_lambda_.1} parent=1 // pred_fallthru
      _
    // Predicated region
    $region14: #{_lambda_.1} parent=1 // pred_check
      _
    $region15: #{_lambda_.1} parent=1 // pred_check_branch
      %50 = sbr.rel (0) target = $region17
    $region16: #{_lambda_.1} parent=1 // pred_region
      %s52 = ssub.s32 512, 512
      %53 = vsyncadd [#allocation9], %s52
      %s54 = sshll.u32 [#allocation8], 4
      %s55 = int_to_ptr.vmem [resolvable:$true] %s54
      %60 = dma.hbm_to_vmem [thread:$0]  %s3, 512, %s55, [#allocation9], 128, 128, 8
    $region17: #{_lambda_.1} parent=1 // pred_fallthru
      _
    // Predicated region
    $region18: #{_lambda_.1} parent=1 // pred_check
      _
    $region19: #{_lambda_.1} parent=1 // pred_check_branch
      %62 = sbr.rel (0) target = $region21
    $region20: #{_lambda_.1} parent=1 // pred_region
      _
    $region21: #{_lambda_.1} parent=1 // pred_fallthru
      _
    // Predicated region
    $region22: #{_lambda_.1} parent=1 // pred_check
      _
    $region23: #{_lambda_.1} parent=1 // pred_check_branch
      %64 = sbr.rel (0) target = $region25
    $region24: #{_lambda_.1} parent=1 // pred_region
      %65 = dma.done [#allocation3], 128
    $region25: #{_lambda_.1} parent=1 // pred_fallthru
      _
    // Predicated region
    $region26: #{_lambda_.1} parent=1 // pred_check
      _
    $region27: #{_lambda_.1} parent=1 // pred_check_branch
      %67 = sbr.rel (0) target = $region29
    $region28: #{_lambda_.1} parent=1 // pred_region
      %68 = dma.done [#allocation6], 128
    $region29: #{_lambda_.1} parent=1 // pred_fallthru
      _
    // Predicated region
    $region30: #{_lambda_.1} parent=1 // pred_check
      _
    $region31: #{_lambda_.1} parent=1 // pred_check_branch
      %70 = sbr.rel (0) target = $region33
    $region32: #{_lambda_.1} parent=1 // pred_region
      %71 = dma.done [#allocation6], 256
    $region33: #{_lambda_.1} parent=1 // pred_fallthru
      _
    // Predicated region
    $region34: #{_lambda_.1} parent=1 // pred_check
      _
    $region35: #{_lambda_.1} parent=1 // pred_check_branch
      %73 = sbr.rel (0) target = $region37
    $region36: #{_lambda_.1} parent=1 // pred_region
      %74 = dma.done [#allocation9], 512
    $region37: #{_lambda_.1} parent=1 // pred_fallthru
      _
    %v75 = vld [vmem:[#allocation2] sm:$0xff]
    %v76 = vld [vmem:[#allocation7] sm:$0xff]
    %v77 = vld [vmem:[#allocation7 + $0x8] sm:$0xff]
    %v78 = vld [vmem:[#allocation5] sm:$0xff]
    %v79 = vld [vmem:[#allocation8] sm:$0xff]
    %v80 = vld [vmem:[#allocation8 + $0x8] sm:$0xff]
    %v81 = vld [vmem:[#allocation8 + $0x10] sm:$0xff]
    %v82 = vld [vmem:[#allocation8 + $0x18] sm:$0xff]
    %vm83 = vcmask 261120
    %v85 = vsel %vm83, %v78, 0
    %87 = vmatprep.subr.mxu0 0.0
    %88 = vmatpush1.msra.mxu0 0.0
    %89 = vmatprep.subr.mxu0 0.0
    %90 = vmatpush1.msra.mxu0 0.0
    %91 = vmatprep.subr.mxu0 0.0
    %92 = vmatpush1.msra.mxu0 0.0
    %93 = vmatprep.subr.mxu0 0.0
    %94 = vmatpush1.msra.mxu0 0.0
    %95 = vmatprep.subr.mxu0 0.0
    %96 = vmatpush1.msra.mxu0 0.0
    %97 = vmatprep.subr.mxu0 0.0
    %98 = vmatpush1.msra.mxu0 0.0
    %99 = vmatprep.subr.mxu0 0.0
    %100 = vmatpush1.msra.mxu0 0.0
    %101 = vmatprep.subr.mxu0 0.0
    %102 = vmatpush1.msra.mxu0 0.0
    %103 = vmatprep.subr.mxu0 0.0
    %104 = vmatpush1.msra.mxu0 0.0
    %105 = vmatprep.subr.mxu0 0.0
    %106 = vmatpush1.msra.mxu0 0.0
    %107 = vmatprep.subr.mxu0 0.0
    %108 = vmatpush1.msra.mxu0 0.0
    %109 = vmatprep.subr.mxu0 0.0
    %110 = vmatpush1.msra.mxu0 0.0
    %111 = vmatprep.subr.mxu0 0.0
    %112 = vmatpush1.msra.mxu0 %v82
    %113 = vmatprep.subr.mxu0 0.0
    %114 = vmatpush1.msra.mxu0 %v81
    %115 = vmatprep.subr.mxu0 0.0
    %116 = vmatpush1.msra.mxu0 %v80
    %117 = vmatprep.subr.mxu0 0.0
    %118 = vmatpush1.msra.mxu0 %v79
    %119 = vmatprep.subr.mxu0 0.0
    %120 = vmatpush2.msra.mxu0 0.0
    %121 = vmatprep.subr.mxu0 0.0
    %122 = vmatpush2.msra.mxu0 0.0
    %123 = vmatprep.subr.mxu0 0.0
    %124 = vmatpush2.msra.mxu0 0.0
    %125 = vmatprep.subr.mxu0 0.0
    %126 = vmatpush2.msra.mxu0 0.0
    %127 = vmatprep.subr.mxu0 0.0
    %128 = vmatpush2.msra.mxu0 0.0
    %129 = vmatprep.subr.mxu0 0.0
    %130 = vmatpush2.msra.mxu0 0.0
    %131 = vmatprep.subr.mxu0 0.0
    %132 = vmatpush2.msra.mxu0 0.0
    %133 = vmatprep.subr.mxu0 0.0
    %134 = vmatpush2.msra.mxu0 0.0
    %135 = vmatprep.subr.mxu0 0.0
    %136 = vmatpush2.msra.mxu0 0.0
    %137 = vmatprep.subr.mxu0 0.0
    %138 = vmatpush2.msra.mxu0 0.0
    %139 = vmatprep.subr.mxu0 0.0
    %140 = vmatpush2.msra.mxu0 0.0
    %141 = vmatprep.subr.mxu0 0.0
    %142 = vmatpush2.msra.mxu0 0.0
    %143 = vmatprep.subr.mxu0 0.0
    %144 = vmatpush2.msra.mxu0 0.0
    %145 = vmatprep.subr.mxu0 0.0
    %146 = vmatpush2.msra.mxu0 0.0
    %147 = vmatprep.subr.mxu0 0.0
    %148 = vmatpush2.msra.mxu0 0.0
    %149 = vmatprep.subr.mxu0 0.0
    %150 = vmatpush2.msra.mxu0 0.0
    %151 = vmatprep.mubr.f32.mxu0 0.0
    %152 = vmatmul.mubr.f32.gmra.mxu0 %v85
    %v153 = vpop.f32.mrf.mxu0
    %v154 = vadd.f32 0.0, %v153
    %v155 = vpop.f32.mrf.mxu0
    %156 = vdwg.mxu0
    %vm157 = vcmask 130048
    %v159 = vsel %vm157, %v75, 0
    %161 = vmatprep.subr.mxu0 0.0
    %162 = vmatpush1.msra.mxu0 0.0
    %163 = vmatprep.subr.mxu0 0.0
    %164 = vmatpush1.msra.mxu0 0.0
    %165 = vmatprep.subr.mxu0 0.0
    %166 = vmatpush1.msra.mxu0 0.0
    %167 = vmatprep.subr.mxu0 0.0
    %168 = vmatpush1.msra.mxu0 0.0
    %169 = vmatprep.subr.mxu0 0.0
    %170 = vmatpush1.msra.mxu0 0.0
    %171 = vmatprep.subr.mxu0 0.0
    %172 = vmatpush1.msra.mxu0 0.0
    %173 = vmatprep.subr.mxu0 0.0
    %174 = vmatpush1.msra.mxu0 0.0
    %175 = vmatprep.subr.mxu0 0.0
    %176 = vmatpush1.msra.mxu0 0.0
    %177 = vmatprep.subr.mxu0 0.0
    %178 = vmatpush1.msra.mxu0 0.0
    %179 = vmatprep.subr.mxu0 0.0
    %180 = vmatpush1.msra.mxu0 0.0
    %181 = vmatprep.subr.mxu0 0.0
    %182 = vmatpush1.msra.mxu0 0.0
    %183 = vmatprep.subr.mxu0 0.0
    %184 = vmatpush1.msra.mxu0 0.0
    %185 = vmatprep.subr.mxu0 0.0
    %186 = vmatpush1.msra.mxu0 0.0
    %187 = vmatprep.subr.mxu0 0.0
    %188 = vmatpush1.msra.mxu0 0.0
    %189 = vmatprep.subr.mxu0 0.0
    %190 = vmatpush1.msra.mxu0 %v77
    %191 = vmatprep.subr.mxu0 0.0
    %192 = vmatpush1.msra.mxu0 %v76
    %193 = vmatprep.subr.mxu0 0.0
    %194 = vmatpush2.msra.mxu0 0.0
    %195 = vmatprep.subr.mxu0 0.0
    %196 = vmatpush2.msra.mxu0 0.0
    %197 = vmatprep.subr.mxu0 0.0
    %198 = vmatpush2.msra.mxu0 0.0
    %199 = vmatprep.subr.mxu0 0.0
    %200 = vmatpush2.msra.mxu0 0.0
    %201 = vmatprep.subr.mxu0 0.0
    %202 = vmatpush2.msra.mxu0 0.0
    %203 = vmatprep.subr.mxu0 0.0
    %204 = vmatpush2.msra.mxu0 0.0
    %205 = vmatprep.subr.mxu0 0.0
    %206 = vmatpush2.msra.mxu0 0.0
    %207 = vmatprep.subr.mxu0 0.0
    %208 = vmatpush2.msra.mxu0 0.0
    %209 = vmatprep.subr.mxu0 0.0
    %210 = vmatpush2.msra.mxu0 0.0
    %211 = vmatprep.subr.mxu0 0.0
    %212 = vmatpush2.msra.mxu0 0.0
    %213 = vmatprep.subr.mxu0 0.0
    %214 = vmatpush2.msra.mxu0 0.0
    %215 = vmatprep.subr.mxu0 0.0
    %216 = vmatpush2.msra.mxu0 0.0
    %217 = vmatprep.subr.mxu0 0.0
    %218 = vmatpush2.msra.mxu0 0.0
    %219 = vmatprep.subr.mxu0 0.0
    %220 = vmatpush2.msra.mxu0 0.0
    %221 = vmatprep.subr.mxu0 0.0
    %222 = vmatpush2.msra.mxu0 0.0
    %223 = vmatprep.subr.mxu0 0.0
    %224 = vmatpush2.msra.mxu0 0.0
    %225 = vmatprep.mubr.f32.mxu0 0.0
    %226 = vmatmul.mubr.f32.gmra.mxu0 %v159
    %v227 = vpop.f32.mrf.mxu0
    %v228 = vadd.f32 %v154, %v227
    %v229 = vpop.f32.mrf.mxu0
    %230 = vdwg.mxu0
    %v231 = vld [vmem:[%s4] sm:$0x1]
    %v233 = vlaneseq
    %v234 = vshrl.u32 %v233, 7
    %v235 = vsub.s32 0, %v234
    %v236 = vrot.slane %v231, %v235
    %v238 = vadd.f32 %v228, %v236
    %239 = vst.msk [vmem:[#allocation11] sm:$0xff] %vm83, %v238
    %vm240 = vcmask 326912
    %v241 = vsel %vm240, %v238, -inf
    %242 = vmax.xlane.f32.xlu0 %v241
    %v243 = vpop.xlane.xlu0 %242
    %v244 = vsub.f32 %v238, %v243
    %v245 = vmul.f32 %v244, 1.442695
    %v246 = vpow.pop %v245
    %248 = vrot.lane.b32.xlu0 %v246, 96
    %v249 = vpop.permute.xlu0 %248
    %vm251 = vcmask 64512
    %v252 = vsel %vm251, %v249, 0.0
    %253 = vadd.xlane.f32.xlu0 %v252
    %v254 = vpop.xlane.xlu0 %253
    %v255 = vlog2.pop %v254
    %v256 = vmul.f32 %v255, 0.6931472
    %v257 = vsub.f32 %v244, %v256
    %259 = vrot.lane.b32.xlu0 %v257, 96
    %v260 = vpop.permute.xlu0 %259
    %262 = vst.msk [vmem:[#allocation10] sm:$0xff] %vm251, %v260
    // Predicated region
    $region38: #{_lambda_.1} parent=1 // pred_check
      _
    $region39: #{_lambda_.1} parent=1 // pred_check_branch
      %264 = sbr.rel (0) target = $region41
    $region40: #{_lambda_.1} parent=1 // pred_region
      %s266 = ssub.s32 128, 128
      %267 = vsyncadd [#allocation4], %s266
      %s269 = sshll.u32 [#allocation10], 4
      %s270 = int_to_ptr.vmem [resolvable:$true] %s269
      %272 = dma.vmem_to_hbm [thread:$0]  %s270, 128, %s5, [#allocation4]
    $region41: #{_lambda_.1} parent=1 // pred_fallthru
      _
    // Predicated region
    $region42: #{_lambda_.1} parent=1 // pred_check
      _
    $region43: #{_lambda_.1} parent=1 // pred_check_branch
      %274 = sbr.rel (0) target = $region45
    $region44: #{_lambda_.1} parent=1 // pred_region
      %s276 = ssub.s32 128, 128
      %277 = vsyncadd [#allocation12], %s276
      %s279 = sshll.u32 [#allocation11], 4
      %s280 = int_to_ptr.vmem [resolvable:$true] %s279
      %282 = dma.vmem_to_hbm [thread:$0]  %s280, 128, %s6, [#allocation12]
    $region45: #{_lambda_.1} parent=1 // pred_fallthru
      _
    // Predicated region
    $region46: #{_lambda_.1} parent=1 // pred_check
      _
    $region47: #{_lambda_.1} parent=1 // pred_check_branch
      %284 = sbr.rel (0) target = $region49
    $region48: #{_lambda_.1} parent=1 // pred_region
      %285 = dma.done [#allocation4], 128
    $region49: #{_lambda_.1} parent=1 // pred_fallthru
      _
    // Predicated region
    $region50: #{_lambda_.1} parent=1 // pred_check
      _
    $region51: #{_lambda_.1} parent=1 // pred_check_branch
      %287 = sbr.rel (0) target = $region53
    $region52: #{_lambda_.1} parent=1 // pred_region
      %288 = dma.done [#allocation12], 128
    $region53: #{_lambda_.1} parent=1 // pred_fallthru
      _
    %289 = vsyncpa [#allocation3], 1
    %290 = vsyncpa [#allocation6], 1
    %291 = vsyncpa [#allocation9], 1
    %292 = vsyncpa [#allocation4], 1
    %293 = vsyncpa [#allocation12], 1

</llo_original>
